<compile_context>
chip_gen: v7x
topology: tpu7x:2x2x1
jax: 0.10.0
libtpu: 0.0.40
codegen_flags: <defaults>
</compile_context>

<pallas_src>
import math

import jax
import jax.numpy as jnp
from jax.experimental import pallas as pl
from jax.experimental.pallas import tpu as pltpu

EPS = 1e-5


def _is_pow2(n):
    return n > 0 and (n & (n - 1)) == 0


def _group_reduce(row, c, w):
    """(1, w*c) -> (1, c): sum the w channel groups.

    Power-of-two w: log2(w) circular roll-and-add steps (XLU), then take the
    first c lanes.  Otherwise fall back to the unrolled slice+add loop.
    """
    if w == 1:
        return row
    if _is_pow2(w):
        r = row
        shift = c
        while shift < w * c:
            r = r + pltpu.roll(r, shift=shift, axis=1)
            shift *= 2
        return r[:, :c]
    s = row[:, :c]
    for i in range(1, w):
        s = s + row[:, i * c:(i + 1) * c]
    return s


def _tile_groups(vec, c, w):
    """(1, c) -> (1, w*c): repeat the per-channel pattern w times.

    Power-of-two w: pad with zeros once, then log2(w) roll-doubling adds
    (each group receives the pattern exactly once).  Otherwise concatenate.
    """
    if w == 1:
        return vec
    if _is_pow2(w):
        r = jnp.concatenate(
            [vec, jnp.zeros((1, (w - 1) * c), vec.dtype)], axis=1)
        shift = c
        while shift < w * c:
            r = r + pltpu.roll(r, shift=shift, axis=1)
            shift *= 2
        return r
    return jnp.concatenate([vec] * w, axis=1)


def double_conv_kernel(x_ref, w1_ref, g1_ref, b1_ref, w2_ref, g2_ref, b2_ref,
                       out_ref, xpad, y1pad):
    # x_ref : (N, H, W*Cin)        bf16 lane-dense rows (no padding)
    # w1_ref: (3*W*Cin,  W*Cmid)   bf16 banded weight, ky taps stacked along K
    # w2_ref: (3*W*Cmid, W*Cout)   bf16
    # g/b   : (1, C) f32
    # out   : (N, H, W*Cout) f32
    # xpad  : (N, H+2, W*Cin)  bf16 scratch (H halo; W pad lives in the band)
    # y1pad : (N, H+2, W*Cmid) bf16 scratch
    N, H, K1 = x_ref.shape
    Cmid = g1_ref.shape[-1]
    Cout = g2_ref.shape[-1]
    M1 = w1_ref.shape[-1]            # W * Cmid
    M2 = w2_ref.shape[-1]            # W * Cout
    W = M1 // Cmid
    inv_cnt = 1.0 / float(N * H * W)

    # ---- stage x with H halo (pad folded in-kernel; only 2 rows zeroed) ------
    xpad[:, 0:1, :] = jnp.zeros((N, 1, K1), jnp.bfloat16)
    xpad[:, H + 1:H + 2, :] = jnp.zeros((N, 1, K1), jnp.bfloat16)
    xpad[:, 1:1 + H, :] = x_ref[...]

    # ---- conv1: ONE fused-K matmul (ky taps concatenated along lanes) --------
    # Windows for ky=0,1,2 are lane-concatenated; the (N,H,3K)->(N*H,3K) merge
    # is layout-preserving when H % 8 == 0 (no ref-slice reshape copies).
    lhs1 = jnp.concatenate(
        [xpad[:, dy:dy + H, :] for dy in range(3)], axis=-1)    # (N, H, 3*K1) bf16
    lhs1 = lhs1.reshape(N * H, 3 * K1)
    acc1 = jnp.dot(lhs1, w1_ref[...],
                   preferred_element_type=jnp.float32)          # (N*H, M1) f32

    # ---- BN1 (batch stats over N,H,W) + ReLU ---------------------------------
    # Single-pass sum / sum-of-squares in f32.
    # TODO(synk): switch to a shifted two-pass / Welford form if stats are ever
    # accumulated across tiles (cancellation risk grows with tile count).
    s_row = jnp.sum(acc1, axis=0, keepdims=True)                # (1, M1)
    q_row = jnp.sum(acc1 * acc1, axis=0, keepdims=True)
    s_c = _group_reduce(s_row, Cmid, W)                         # (1, Cmid)
    q_c = _group_reduce(q_row, Cmid, W)
    mean1 = s_c * inv_cnt
    var1 = q_c * inv_cnt - mean1 * mean1
    scale1 = g1_ref[...] * jax.lax.rsqrt(var1 + EPS)            # (1, Cmid)
    shift1 = b1_ref[...] - mean1 * scale1
    scale1_w = _tile_groups(scale1, Cmid, W)                    # (1, M1)
    shift1_w = _tile_groups(shift1, Cmid, W)
    y1 = jnp.maximum(acc1 * scale1_w + shift1_w, 0.0)           # (N*H, M1)

    # ---- stage y1 (bf16) with H halo; lane-aligned interior ------------------
    y1pad[:, 0:1, :] = jnp.zeros((N, 1, M1), jnp.bfloat16)
    y1pad[:, H + 1:H + 2, :] = jnp.zeros((N, 1, M1), jnp.bfloat16)
    y1pad[:, 1:1 + H, :] = y1.astype(jnp.bfloat16).reshape(N, H, M1)

    # ---- conv2: ONE fused-K matmul -------------------------------------------
    lhs2 = jnp.concatenate(
        [y1pad[:, dy:dy + H, :] for dy in range(3)], axis=-1)   # (N, H, 3*M1) bf16
    lhs2 = lhs2.reshape(N * H, 3 * M1)
    acc2 = jnp.dot(lhs2, w2_ref[...],
                   preferred_element_type=jnp.float32)          # (N*H, M2) f32

    # ---- BN2 + ReLU -----------------------------------------------------------
    s_row2 = jnp.sum(acc2, axis=0, keepdims=True)
    q_row2 = jnp.sum(acc2 * acc2, axis=0, keepdims=True)
    s_c2 = _group_reduce(s_row2, Cout, W)
    q_c2 = _group_reduce(q_row2, Cout, W)
    mean2 = s_c2 * inv_cnt
    var2 = q_c2 * inv_cnt - mean2 * mean2
    scale2 = g2_ref[...] * jax.lax.rsqrt(var2 + EPS)
    shift2 = b2_ref[...] - mean2 * scale2
    scale2_w = _tile_groups(scale2, Cout, W)
    shift2_w = _tile_groups(shift2, Cout, W)
    y2 = jnp.maximum(acc2 * scale2_w + shift2_w, 0.0)
    out_ref[...] = y2.reshape(N, H, M2)


def _banded_conv_weights(w_oihw, width):
    """(Cout, Cin, 3, 3) -> (3*width*Cin, width*Cout) fused banded matrix.

    Row index = ky*(width*Cin) + j*Cin + ci, column = x*Cout + co with
    j = x + kx - 1; taps with j outside [0, width) are dropped, implementing the
    conv's zero padding along W inside the weight.  The three ky blocks are
    stacked along K so the kernel can fuse the ky taps into a single matmul.
    """
    c_out, c_in = w_oihw.shape[0], w_oihw.shape[1]
    wk = jnp.transpose(w_oihw, (2, 3, 1, 0))                    # (ky, kx, ci, co)
    kx = jnp.arange(3)[:, None, None]
    x = jnp.arange(width)[None, :, None]
    j = jnp.arange(width)[None, None, :]
    sel = (j == x + kx - 1).astype(w_oihw.dtype)                # (kx, x, j)
    band = jnp.einsum('tdio,dxj->tjixo', wk, sel)               # (ky, j, ci, x, co)
    return band.reshape(3 * width * c_in, width * c_out)


def _device_vmem_bytes():
    try:
        info = pltpu.get_tpu_info()
        return int(getattr(info, "vmem_capacity_bytes", 64 << 20))
    except Exception:
        return 64 << 20   # conservative (v7x per-TC VMEM)


def double_conv(x_nchw, w1, g1, b1, w2, g2, b2):
    """x_nchw: (N, C_in, H, W); w*: PyTorch (C_out, C_in, 3, 3); g*/b*: (C,)."""
    N, Cin, H, W = x_nchw.shape
    Cmid = w1.shape[0]
    Cout = w2.shape[0]

    # NCHW -> lane-dense rows (N, H, W*Cin), bf16 MXU operands.  The H-halo pad
    # is done inside the kernel; the W padding lives inside the banded weights.
    x = jnp.transpose(x_nchw, (0, 2, 3, 1)).reshape(N, H, W * Cin)
    x = x.astype(jnp.bfloat16)

    w1b = _banded_conv_weights(w1, W).astype(jnp.bfloat16)      # (3*W*Cin,  W*Cmid)
    w2b = _banded_conv_weights(w2, W).astype(jnp.bfloat16)      # (3*W*Cmid, W*Cout)
    g1k = g1.reshape(1, Cmid).astype(jnp.float32)
    b1k = b1.reshape(1, Cmid).astype(jnp.float32)
    g2k = g2.reshape(1, Cout).astype(jnp.float32)
    b2k = b2.reshape(1, Cout).astype(jnp.float32)

    inputs = (x, w1b, g1k, b1k, w2b, g2k, b2k)
    out_shape = (N, H, W * Cout)
    xpad_shape = (N, H + 2, W * Cin)
    y1pad_shape = (N, H + 2, W * Cmid)

    # Explicit scoped-VMEM budget, capped by the device's physical VMEM
    # (v7x has only 64 MiB per TensorCore; don't request 100 MiB there).
    vmem_cap = _device_vmem_bytes()
    need = 2 * sum(int(a.size) * a.dtype.itemsize for a in inputs)  # dbl-buffered in
    need += 2 * math.prod(out_shape) * 4                            # dbl-buffered out
    need += math.prod(xpad_shape) * 2 + math.prod(y1pad_shape) * 2  # scratch
    need += 8 << 20                                                 # live temps + slack
    vmem_limit = int(min(max(need, 8 << 20), vmem_cap - (4 << 20)))

    def full_spec(shape):
        zeros = (0,) * len(shape)
        return pl.BlockSpec(shape, lambda i, _z=zeros: _z)

    out_rows = pl.pallas_call(
        double_conv_kernel,
        out_shape=jax.ShapeDtypeStruct(out_shape, jnp.float32),
        grid_spec=pltpu.PrefetchScalarGridSpec(
            num_scalar_prefetch=0,
            grid=(1,),   # BN needs full-batch stats; see multi-pass TODO above
            in_specs=[full_spec(a.shape) for a in inputs],
            out_specs=full_spec(out_shape),
            scratch_shapes=[pltpu.VMEM(xpad_shape, jnp.bfloat16),
                            pltpu.VMEM(y1pad_shape, jnp.bfloat16)],
        ),
        compiler_params=pltpu.CompilerParams(
            dimension_semantics=("arbitrary",),
            vmem_limit_bytes=vmem_limit),
    )(*inputs)

    # (N, H, W*Cout) -> NCHW (external contract of the PyTorch module).
    return jnp.transpose(out_rows.reshape(N, H, W, Cout), (0, 3, 1, 2))


def ref_double_conv(x, w1, g1, b1, w2, g2, b2):
    """Plain-JAX reference (NCHW), mirrors PyTorch train-mode forward.

    Conv operands (activations and weights) are quantized to bf16 to mirror the
    kernel's bf16 MXU inputs; products/accumulation and BatchNorm stay in f32.
    """
    q = lambda t: t.astype(jnp.bfloat16).astype(jnp.float32)

    def conv(x, w):
        return jax.lax.conv_general_dilated(
            q(x), q(w), window_strides=(1, 1), padding=((1, 1), (1, 1)),
            dimension_numbers=('NCHW', 'OIHW', 'NCHW'),
            preferred_element_type=jnp.float32)

    def bn_relu(y, g, b):
        mean = jnp.mean(y, axis=(0, 2, 3), keepdims=True)
        var = jnp.mean((y - mean) ** 2, axis=(0, 2, 3), keepdims=True)
        yn = (y - mean) * jax.lax.rsqrt(var + EPS) * g.reshape(1, -1, 1, 1) \
             + b.reshape(1, -1, 1, 1)
        return jnp.maximum(yn, 0.0)

    y = bn_relu(conv(x, w1), g1, b1)
    return bn_relu(conv(y, w2), g2, b2)


if __name__ == "__main__":
    N, Cin, Cmid, Cout, H, W = 2, 4, 8, 8, 16, 16

    key = jax.random.PRNGKey(0)
    kx, kw1, kw2 = jax.random.split(key, 3)
    x = jax.random.normal(kx, (N, Cin, H, W), dtype=jnp.float32)
    # Conv weights: deterministic small random; BN params match PyTorch init.
    w1 = 0.1 * jax.random.normal(kw1, (Cmid, Cin, 3, 3), dtype=jnp.float32)
    w2 = 0.1 * jax.random.normal(kw2, (Cout, Cmid, 3, 3), dtype=jnp.float32)
    g1, b1 = jnp.ones((Cmid,), jnp.float32), jnp.zeros((Cmid,), jnp.float32)
    g2, b2 = jnp.ones((Cout,), jnp.float32), jnp.zeros((Cout,), jnp.float32)

    out = double_conv(x, w1, g1, b1, w2, g2, b2)
    out = jax.block_until_ready(out)

    ref = jax.block_until_ready(ref_double_conv(x, w1, g1, b1, w2, g2, b2))
    assert out.shape == (N, Cout, H, W)
    assert jnp.allclose(out, ref, atol=5e-3, rtol=5e-3), \
        f"max abs diff {jnp.max(jnp.abs(out - ref))}"

    print("KERNEL_OK")
</pallas_src>

<mosaic_0001>
module attributes {stable_mosaic.version = 11 : i64} {
  func.func @double_conv_kernel(%arg0: i32, %arg1: memref<2x16x64xbf16, #tpu.memory_space<vmem>>, %arg2: memref<192x128xbf16, #tpu.memory_space<vmem>>, %arg3: memref<1x8xf32, #tpu.memory_space<vmem>>, %arg4: memref<1x8xf32, #tpu.memory_space<vmem>>, %arg5: memref<384x128xbf16, #tpu.memory_space<vmem>>, %arg6: memref<1x8xf32, #tpu.memory_space<vmem>>, %arg7: memref<1x8xf32, #tpu.memory_space<vmem>>, %arg8: memref<2x16x128xf32, #tpu.memory_space<vmem>>, %arg9: memref<2x18x64xbf16, #tpu.memory_space<vmem>>, %arg10: memref<2x18x128xbf16, #tpu.memory_space<vmem>>) attributes {dimension_semantics = [#tpu.dimension_semantics<arbitrary>], iteration_bounds = array<i64: 1>, scalar_prefetch = 0 : i64, scratch_operands = 2 : i64, tpu.core_type = #tpu.core_type<tc>, window_params = [{pipeline_mode = #tpu.pipeline_mode<synchronous>, transform_indices = @transform_0, window_bounds = array<i64: 2, 16, 64>}, {pipeline_mode = #tpu.pipeline_mode<synchronous>, transform_indices = @transform_1, window_bounds = array<i64: 192, 128>}, {pipeline_mode = #tpu.pipeline_mode<synchronous>, transform_indices = @transform_2, window_bounds = array<i64: 1, 8>}, {pipeline_mode = #tpu.pipeline_mode<synchronous>, transform_indices = @transform_3, window_bounds = array<i64: 1, 8>}, {pipeline_mode = #tpu.pipeline_mode<synchronous>, transform_indices = @transform_4, window_bounds = array<i64: 384, 128>}, {pipeline_mode = #tpu.pipeline_mode<synchronous>, transform_indices = @transform_5, window_bounds = array<i64: 1, 8>}, {pipeline_mode = #tpu.pipeline_mode<synchronous>, transform_indices = @transform_6, window_bounds = array<i64: 1, 8>}, {pipeline_mode = #tpu.pipeline_mode<synchronous>, transform_indices = @transform_7, window_bounds = array<i64: 2, 16, 128>}]} {
    %cst = arith.constant 0.000000e+00 : bf16
    %0 = vector.broadcast %cst : bf16 to vector<2x1x64xbf16>
    %c0 = arith.constant 0 : index
    %c0_0 = arith.constant 0 : index
    %c0_1 = arith.constant 0 : index
    %1 = vector.load %arg9[%c0, %c0_0, %c0_1] : memref<2x18x64xbf16, #tpu.memory_space<vmem>>, vector<2x1x64xbf16>
    tpu.vector_store %arg9[%c0, %c0_0, %c0_1], %0 {strides = array<i32>} : memref<2x18x64xbf16, #tpu.memory_space<vmem>>, vector<2x1x64xbf16>,
    %cst_2 = arith.constant 0.000000e+00 : bf16
    %2 = vector.broadcast %cst_2 : bf16 to vector<2x1x64xbf16>
    %c0_3 = arith.constant 0 : index
    %c17 = arith.constant 17 : index
    %c0_4 = arith.constant 0 : index
    %3 = vector.load %arg9[%c0_3, %c17, %c0_4] : memref<2x18x64xbf16, #tpu.memory_space<vmem>>, vector<2x1x64xbf16>
    tpu.vector_store %arg9[%c0_3, %c17, %c0_4], %2 {strides = array<i32>} : memref<2x18x64xbf16, #tpu.memory_space<vmem>>, vector<2x1x64xbf16>,
    %c0_5 = arith.constant 0 : index
    %c0_6 = arith.constant 0 : index
    %c0_7 = arith.constant 0 : index
    %4 = vector.load %arg1[%c0_5, %c0_6, %c0_7] : memref<2x16x64xbf16, #tpu.memory_space<vmem>>, vector<2x16x64xbf16>
    %c0_8 = arith.constant 0 : index
    %c1 = arith.constant 1 : index
    %c0_9 = arith.constant 0 : index
    %5 = vector.load %arg9[%c0_8, %c1, %c0_9] : memref<2x18x64xbf16, #tpu.memory_space<vmem>>, vector<2x16x64xbf16>
    tpu.vector_store %arg9[%c0_8, %c1, %c0_9], %4 {strides = array<i32>} : memref<2x18x64xbf16, #tpu.memory_space<vmem>>, vector<2x16x64xbf16>,
    %c0_10 = arith.constant 0 : index
    %c0_11 = arith.constant 0 : index
    %c0_12 = arith.constant 0 : index
    %6 = vector.load %arg9[%c0_10, %c0_11, %c0_12] : memref<2x18x64xbf16, #tpu.memory_space<vmem>>, vector<2x16x64xbf16>
    %c0_13 = arith.constant 0 : index
    %c1_14 = arith.constant 1 : index
    %c0_15 = arith.constant 0 : index
    %7 = vector.load %arg9[%c0_13, %c1_14, %c0_15] : memref<2x18x64xbf16, #tpu.memory_space<vmem>>, vector<2x16x64xbf16>
    %c0_16 = arith.constant 0 : index
    %c2 = arith.constant 2 : index
    %c0_17 = arith.constant 0 : index
    %8 = vector.load %arg9[%c0_16, %c2, %c0_17] : memref<2x18x64xbf16, #tpu.memory_space<vmem>>, vector<2x16x64xbf16>
    %9 = tpu.concatenate %6, %7, %8 in 2 : vector<2x16x64xbf16>, vector<2x16x64xbf16>, vector<2x16x64xbf16> -> vector<2x16x192xbf16>
    %10 = vector.shape_cast %9 : vector<2x16x192xbf16> to vector<32x192xbf16>
    %c0_18 = arith.constant 0 : index
    %c0_19 = arith.constant 0 : index
    %11 = vector.load %arg2[%c0_18, %c0_19] : memref<192x128xbf16, #tpu.memory_space<vmem>>, vector<192x128xbf16>
    %cst_20 = arith.constant dense<0.000000e+00> : vector<32x128xf32>
    %12 = tpu.matmul %10, %11, %cst_20 {dimension_numbers = #tpu.dot_dimension_numbers<[1], [0], [0], [1], [0, 0, 1, 1], [], []>} : vector<32x192xbf16>, vector<192x128xbf16>, vector<32x128xf32> -> vector<32x128xf32>
    %cst_21 = arith.constant dense<0.000000e+00> : vector<128xf32>
    %13 = vector.multi_reduction <add>, %12, %cst_21 [0] : vector<32x128xf32> to vector<128xf32>
    %14 = vector.shape_cast %13 : vector<128xf32> to vector<1x128xf32>
    %15 = arith.mulf %12, %12 : vector<32x128xf32>
    %cst_22 = arith.constant dense<0.000000e+00> : vector<128xf32>
    %16 = vector.multi_reduction <add>, %15, %cst_22 [0] : vector<32x128xf32> to vector<128xf32>
    %17 = vector.shape_cast %16 : vector<128xf32> to vector<1x128xf32>
    %c8_i32 = arith.constant 8 : i32
    %18 = tpu.dynamic_rotate %14 by %c8_i32 dim 1 : vector<1x128xf32>, i32 -> vector<1x128xf32>
    %19 = arith.addf %14, %18 : vector<1x128xf32>
    %c16_i32 = arith.constant 16 : i32
    %20 = tpu.dynamic_rotate %19 by %c16_i32 dim 1 : vector<1x128xf32>, i32 -> vector<1x128xf32>
    %21 = arith.addf %19, %20 : vector<1x128xf32>
    %c32_i32 = arith.constant 32 : i32
    %22 = tpu.dynamic_rotate %21 by %c32_i32 dim 1 : vector<1x128xf32>, i32 -> vector<1x128xf32>
    %23 = arith.addf %21, %22 : vector<1x128xf32>
    %c64_i32 = arith.constant 64 : i32
    %24 = tpu.dynamic_rotate %23 by %c64_i32 dim 1 : vector<1x128xf32>, i32 -> vector<1x128xf32>
    %25 = arith.addf %23, %24 : vector<1x128xf32>
    %26 = vector.extract_strided_slice %25 {offsets = [0, 0], sizes = [1, 8], strides = [1, 1]} : vector<1x128xf32> to vector<1x8xf32>
    %c8_i32_23 = arith.constant 8 : i32
    %27 = tpu.dynamic_rotate %17 by %c8_i32_23 dim 1 : vector<1x128xf32>, i32 -> vector<1x128xf32>
    %28 = arith.addf %17, %27 : vector<1x128xf32>
    %c16_i32_24 = arith.constant 16 : i32
    %29 = tpu.dynamic_rotate %28 by %c16_i32_24 dim 1 : vector<1x128xf32>, i32 -> vector<1x128xf32>
    %30 = arith.addf %28, %29 : vector<1x128xf32>
    %c32_i32_25 = arith.constant 32 : i32
    %31 = tpu.dynamic_rotate %30 by %c32_i32_25 dim 1 : vector<1x128xf32>, i32 -> vector<1x128xf32>
    %32 = arith.addf %30, %31 : vector<1x128xf32>
    %c64_i32_26 = arith.constant 64 : i32
    %33 = tpu.dynamic_rotate %32 by %c64_i32_26 dim 1 : vector<1x128xf32>, i32 -> vector<1x128xf32>
    %34 = arith.addf %32, %33 : vector<1x128xf32>
    %35 = vector.extract_strided_slice %34 {offsets = [0, 0], sizes = [1, 8], strides = [1, 1]} : vector<1x128xf32> to vector<1x8xf32>
    %cst_27 = arith.constant 0.001953125 : f32
    %36 = vector.broadcast %cst_27 : f32 to vector<1x8xf32>
    %37 = arith.mulf %26, %36 : vector<1x8xf32>
    %cst_28 = arith.constant 0.001953125 : f32
    %38 = vector.broadcast %cst_28 : f32 to vector<1x8xf32>
    %39 = arith.mulf %35, %38 : vector<1x8xf32>
    %40 = arith.mulf %37, %37 : vector<1x8xf32>
    %41 = arith.subf %39, %40 : vector<1x8xf32>
    %c0_29 = arith.constant 0 : index
    %c0_30 = arith.constant 0 : index
    %42 = vector.load %arg3[%c0_29, %c0_30] : memref<1x8xf32, #tpu.memory_space<vmem>>, vector<1x8xf32>
    %cst_31 = arith.constant 9.99999974E-6 : f32
    %43 = vector.broadcast %cst_31 : f32 to vector<1x8xf32>
    %44 = arith.addf %41, %43 : vector<1x8xf32>
    %45 = math.rsqrt %44 : vector<1x8xf32>
    %46 = arith.mulf %42, %45 : vector<1x8xf32>
    %c0_32 = arith.constant 0 : index
    %c0_33 = arith.constant 0 : index
    %47 = vector.load %arg4[%c0_32, %c0_33] : memref<1x8xf32, #tpu.memory_space<vmem>>, vector<1x8xf32>
    %48 = arith.mulf %37, %46 : vector<1x8xf32>
    %49 = arith.subf %47, %48 : vector<1x8xf32>
    %cst_34 = arith.constant 0.000000e+00 : f32
    %50 = vector.broadcast %cst_34 : f32 to vector<1x120xf32>
    %51 = tpu.concatenate %46, %50 in 1 : vector<1x8xf32>, vector<1x120xf32> -> vector<1x128xf32>
    %c8_i32_35 = arith.constant 8 : i32
    %52 = tpu.dynamic_rotate %51 by %c8_i32_35 dim 1 : vector<1x128xf32>, i32 -> vector<1x128xf32>
    %53 = arith.addf %51, %52 : vector<1x128xf32>
    %c16_i32_36 = arith.constant 16 : i32
    %54 = tpu.dynamic_rotate %53 by %c16_i32_36 dim 1 : vector<1x128xf32>, i32 -> vector<1x128xf32>
    %55 = arith.addf %53, %54 : vector<1x128xf32>
    %c32_i32_37 = arith.constant 32 : i32
    %56 = tpu.dynamic_rotate %55 by %c32_i32_37 dim 1 : vector<1x128xf32>, i32 -> vector<1x128xf32>
    %57 = arith.addf %55, %56 : vector<1x128xf32>
    %c64_i32_38 = arith.constant 64 : i32
    %58 = tpu.dynamic_rotate %57 by %c64_i32_38 dim 1 : vector<1x128xf32>, i32 -> vector<1x128xf32>
    %59 = arith.addf %57, %58 : vector<1x128xf32>
    %cst_39 = arith.constant 0.000000e+00 : f32
    %60 = vector.broadcast %cst_39 : f32 to vector<1x120xf32>
    %61 = tpu.concatenate %49, %60 in 1 : vector<1x8xf32>, vector<1x120xf32> -> vector<1x128xf32>
    %c8_i32_40 = arith.constant 8 : i32
    %62 = tpu.dynamic_rotate %61 by %c8_i32_40 dim 1 : vector<1x128xf32>, i32 -> vector<1x128xf32>
    %63 = arith.addf %61, %62 : vector<1x128xf32>
    %c16_i32_41 = arith.constant 16 : i32
    %64 = tpu.dynamic_rotate %63 by %c16_i32_41 dim 1 : vector<1x128xf32>, i32 -> vector<1x128xf32>
    %65 = arith.addf %63, %64 : vector<1x128xf32>
    %c32_i32_42 = arith.constant 32 : i32
    %66 = tpu.dynamic_rotate %65 by %c32_i32_42 dim 1 : vector<1x128xf32>, i32 -> vector<1x128xf32>
    %67 = arith.addf %65, %66 : vector<1x128xf32>
    %c64_i32_43 = arith.constant 64 : i32
    %68 = tpu.dynamic_rotate %67 by %c64_i32_43 dim 1 : vector<1x128xf32>, i32 -> vector<1x128xf32>
    %69 = arith.addf %67, %68 : vector<1x128xf32>
    %70 = vector.broadcast %59 : vector<1x128xf32> to vector<32x128xf32>
    %71 = arith.mulf %12, %70 : vector<32x128xf32>
    %72 = vector.broadcast %69 : vector<1x128xf32> to vector<32x128xf32>
    %73 = arith.addf %71, %72 : vector<32x128xf32>
    %cst_44 = arith.constant 0.000000e+00 : f32
    %74 = vector.broadcast %cst_44 : f32 to vector<32x128xf32>
    %75 = arith.maximumf %73, %74 : vector<32x128xf32>
    %cst_45 = arith.constant 0.000000e+00 : bf16
    %76 = vector.broadcast %cst_45 : bf16 to vector<2x1x128xbf16>
    %c0_46 = arith.constant 0 : index
    %c0_47 = arith.constant 0 : index
    %c0_48 = arith.constant 0 : index
    %77 = vector.load %arg10[%c0_46, %c0_47, %c0_48] : memref<2x18x128xbf16, #tpu.memory_space<vmem>>, vector<2x1x128xbf16>
    tpu.vector_store %arg10[%c0_46, %c0_47, %c0_48], %76 {strides = array<i32>} : memref<2x18x128xbf16, #tpu.memory_space<vmem>>, vector<2x1x128xbf16>,
    %cst_49 = arith.constant 0.000000e+00 : bf16
    %78 = vector.broadcast %cst_49 : bf16 to vector<2x1x128xbf16>
    %c0_50 = arith.constant 0 : index
    %c17_51 = arith.constant 17 : index
    %c0_52 = arith.constant 0 : index
    %79 = vector.load %arg10[%c0_50, %c17_51, %c0_52] : memref<2x18x128xbf16, #tpu.memory_space<vmem>>, vector<2x1x128xbf16>
    tpu.vector_store %arg10[%c0_50, %c17_51, %c0_52], %78 {strides = array<i32>} : memref<2x18x128xbf16, #tpu.memory_space<vmem>>, vector<2x1x128xbf16>,
    %80 = arith.truncf %75 : vector<32x128xf32> to vector<32x128xbf16>
    %81 = vector.shape_cast %80 : vector<32x128xbf16> to vector<2x16x128xbf16>
    %c0_53 = arith.constant 0 : index
    %c1_54 = arith.constant 1 : index
    %c0_55 = arith.constant 0 : index
    %82 = vector.load %arg10[%c0_53, %c1_54, %c0_55] : memref<2x18x128xbf16, #tpu.memory_space<vmem>>, vector<2x16x128xbf16>
    tpu.vector_store %arg10[%c0_53, %c1_54, %c0_55], %81 {strides = array<i32>} : memref<2x18x128xbf16, #tpu.memory_space<vmem>>, vector<2x16x128xbf16>,
    %c0_56 = arith.constant 0 : index
    %c0_57 = arith.constant 0 : index
    %c0_58 = arith.constant 0 : index
    %83 = vector.load %arg10[%c0_56, %c0_57, %c0_58] : memref<2x18x128xbf16, #tpu.memory_space<vmem>>, vector<2x16x128xbf16>
    %c0_59 = arith.constant 0 : index
    %c1_60 = arith.constant 1 : index
    %c0_61 = arith.constant 0 : index
    %84 = vector.load %arg10[%c0_59, %c1_60, %c0_61] : memref<2x18x128xbf16, #tpu.memory_space<vmem>>, vector<2x16x128xbf16>
    %c0_62 = arith.constant 0 : index
    %c2_63 = arith.constant 2 : index
    %c0_64 = arith.constant 0 : index
    %85 = vector.load %arg10[%c0_62, %c2_63, %c0_64] : memref<2x18x128xbf16, #tpu.memory_space<vmem>>, vector<2x16x128xbf16>
    %86 = tpu.concatenate %83, %84, %85 in 2 : vector<2x16x128xbf16>, vector<2x16x128xbf16>, vector<2x16x128xbf16> -> vector<2x16x384xbf16>
    %87 = vector.shape_cast %86 : vector<2x16x384xbf16> to vector<32x384xbf16>
    %c0_65 = arith.constant 0 : index
    %c0_66 = arith.constant 0 : index
    %88 = vector.load %arg5[%c0_65, %c0_66] : memref<384x128xbf16, #tpu.memory_space<vmem>>, vector<384x128xbf16>
    %cst_67 = arith.constant dense<0.000000e+00> : vector<32x128xf32>
    %89 = tpu.matmul %87, %88, %cst_67 {dimension_numbers = #tpu.dot_dimension_numbers<[1], [0], [0], [1], [0, 0, 1, 1], [], []>} : vector<32x384xbf16>, vector<384x128xbf16>, vector<32x128xf32> -> vector<32x128xf32>
    %cst_68 = arith.constant dense<0.000000e+00> : vector<128xf32>
    %90 = vector.multi_reduction <add>, %89, %cst_68 [0] : vector<32x128xf32> to vector<128xf32>
    %91 = vector.shape_cast %90 : vector<128xf32> to vector<1x128xf32>
    %92 = arith.mulf %89, %89 : vector<32x128xf32>
    %cst_69 = arith.constant dense<0.000000e+00> : vector<128xf32>
    %93 = vector.multi_reduction <add>, %92, %cst_69 [0] : vector<32x128xf32> to vector<128xf32>
    %94 = vector.shape_cast %93 : vector<128xf32> to vector<1x128xf32>
    %c8_i32_70 = arith.constant 8 : i32
    %95 = tpu.dynamic_rotate %91 by %c8_i32_70 dim 1 : vector<1x128xf32>, i32 -> vector<1x128xf32>
    %96 = arith.addf %91, %95 : vector<1x128xf32>
    %c16_i32_71 = arith.constant 16 : i32
    %97 = tpu.dynamic_rotate %96 by %c16_i32_71 dim 1 : vector<1x128xf32>, i32 -> vector<1x128xf32>
    %98 = arith.addf %96, %97 : vector<1x128xf32>
    %c32_i32_72 = arith.constant 32 : i32
    %99 = tpu.dynamic_rotate %98 by %c32_i32_72 dim 1 : vector<1x128xf32>, i32 -> vector<1x128xf32>
    %100 = arith.addf %98, %99 : vector<1x128xf32>
    %c64_i32_73 = arith.constant 64 : i32
    %101 = tpu.dynamic_rotate %100 by %c64_i32_73 dim 1 : vector<1x128xf32>, i32 -> vector<1x128xf32>
    %102 = arith.addf %100, %101 : vector<1x128xf32>
    %103 = vector.extract_strided_slice %102 {offsets = [0, 0], sizes = [1, 8], strides = [1, 1]} : vector<1x128xf32> to vector<1x8xf32>
    %c8_i32_74 = arith.constant 8 : i32
    %104 = tpu.dynamic_rotate %94 by %c8_i32_74 dim 1 : vector<1x128xf32>, i32 -> vector<1x128xf32>
    %105 = arith.addf %94, %104 : vector<1x128xf32>
    %c16_i32_75 = arith.constant 16 : i32
    %106 = tpu.dynamic_rotate %105 by %c16_i32_75 dim 1 : vector<1x128xf32>, i32 -> vector<1x128xf32>
    %107 = arith.addf %105, %106 : vector<1x128xf32>
    %c32_i32_76 = arith.constant 32 : i32
    %108 = tpu.dynamic_rotate %107 by %c32_i32_76 dim 1 : vector<1x128xf32>, i32 -> vector<1x128xf32>
    %109 = arith.addf %107, %108 : vector<1x128xf32>
    %c64_i32_77 = arith.constant 64 : i32
    %110 = tpu.dynamic_rotate %109 by %c64_i32_77 dim 1 : vector<1x128xf32>, i32 -> vector<1x128xf32>
    %111 = arith.addf %109, %110 : vector<1x128xf32>
    %112 = vector.extract_strided_slice %111 {offsets = [0, 0], sizes = [1, 8], strides = [1, 1]} : vector<1x128xf32> to vector<1x8xf32>
    %cst_78 = arith.constant 0.001953125 : f32
    %113 = vector.broadcast %cst_78 : f32 to vector<1x8xf32>
    %114 = arith.mulf %103, %113 : vector<1x8xf32>
    %cst_79 = arith.constant 0.001953125 : f32
    %115 = vector.broadcast %cst_79 : f32 to vector<1x8xf32>
    %116 = arith.mulf %112, %115 : vector<1x8xf32>
    %117 = arith.mulf %114, %114 : vector<1x8xf32>
    %118 = arith.subf %116, %117 : vector<1x8xf32>
    %c0_80 = arith.constant 0 : index
    %c0_81 = arith.constant 0 : index
    %119 = vector.load %arg6[%c0_80, %c0_81] : memref<1x8xf32, #tpu.memory_space<vmem>>, vector<1x8xf32>
    %cst_82 = arith.constant 9.99999974E-6 : f32
    %120 = vector.broadcast %cst_82 : f32 to vector<1x8xf32>
    %121 = arith.addf %118, %120 : vector<1x8xf32>
    %122 = math.rsqrt %121 : vector<1x8xf32>
    %123 = arith.mulf %119, %122 : vector<1x8xf32>
    %c0_83 = arith.constant 0 : index
    %c0_84 = arith.constant 0 : index
    %124 = vector.load %arg7[%c0_83, %c0_84] : memref<1x8xf32, #tpu.memory_space<vmem>>, vector<1x8xf32>
    %125 = arith.mulf %114, %123 : vector<1x8xf32>
    %126 = arith.subf %124, %125 : vector<1x8xf32>
    %cst_85 = arith.constant 0.000000e+00 : f32
    %127 = vector.broadcast %cst_85 : f32 to vector<1x120xf32>
    %128 = tpu.concatenate %123, %127 in 1 : vector<1x8xf32>, vector<1x120xf32> -> vector<1x128xf32>
    %c8_i32_86 = arith.constant 8 : i32
    %129 = tpu.dynamic_rotate %128 by %c8_i32_86 dim 1 : vector<1x128xf32>, i32 -> vector<1x128xf32>
    %130 = arith.addf %128, %129 : vector<1x128xf32>
    %c16_i32_87 = arith.constant 16 : i32
    %131 = tpu.dynamic_rotate %130 by %c16_i32_87 dim 1 : vector<1x128xf32>, i32 -> vector<1x128xf32>
    %132 = arith.addf %130, %131 : vector<1x128xf32>
    %c32_i32_88 = arith.constant 32 : i32
    %133 = tpu.dynamic_rotate %132 by %c32_i32_88 dim 1 : vector<1x128xf32>, i32 -> vector<1x128xf32>
    %134 = arith.addf %132, %133 : vector<1x128xf32>
    %c64_i32_89 = arith.constant 64 : i32
    %135 = tpu.dynamic_rotate %134 by %c64_i32_89 dim 1 : vector<1x128xf32>, i32 -> vector<1x128xf32>
    %136 = arith.addf %134, %135 : vector<1x128xf32>
    %cst_90 = arith.constant 0.000000e+00 : f32
    %137 = vector.broadcast %cst_90 : f32 to vector<1x120xf32>
    %138 = tpu.concatenate %126, %137 in 1 : vector<1x8xf32>, vector<1x120xf32> -> vector<1x128xf32>
    %c8_i32_91 = arith.constant 8 : i32
    %139 = tpu.dynamic_rotate %138 by %c8_i32_91 dim 1 : vector<1x128xf32>, i32 -> vector<1x128xf32>
    %140 = arith.addf %138, %139 : vector<1x128xf32>
    %c16_i32_92 = arith.constant 16 : i32
    %141 = tpu.dynamic_rotate %140 by %c16_i32_92 dim 1 : vector<1x128xf32>, i32 -> vector<1x128xf32>
    %142 = arith.addf %140, %141 : vector<1x128xf32>
    %c32_i32_93 = arith.constant 32 : i32
    %143 = tpu.dynamic_rotate %142 by %c32_i32_93 dim 1 : vector<1x128xf32>, i32 -> vector<1x128xf32>
    %144 = arith.addf %142, %143 : vector<1x128xf32>
    %c64_i32_94 = arith.constant 64 : i32
    %145 = tpu.dynamic_rotate %144 by %c64_i32_94 dim 1 : vector<1x128xf32>, i32 -> vector<1x128xf32>
    %146 = arith.addf %144, %145 : vector<1x128xf32>
    %147 = vector.broadcast %136 : vector<1x128xf32> to vector<32x128xf32>
    %148 = arith.mulf %89, %147 : vector<32x128xf32>
    %149 = vector.broadcast %146 : vector<1x128xf32> to vector<32x128xf32>
    %150 = arith.addf %148, %149 : vector<32x128xf32>
    %cst_95 = arith.constant 0.000000e+00 : f32
    %151 = vector.broadcast %cst_95 : f32 to vector<32x128xf32>
    %152 = arith.maximumf %150, %151 : vector<32x128xf32>
    %153 = vector.shape_cast %152 : vector<32x128xf32> to vector<2x16x128xf32>
    %c0_96 = arith.constant 0 : index
    %c0_97 = arith.constant 0 : index
    %c0_98 = arith.constant 0 : index
    %154 = vector.load %arg8[%c0_96, %c0_97, %c0_98] : memref<2x16x128xf32, #tpu.memory_space<vmem>>, vector<2x16x128xf32>
    tpu.vector_store %arg8[%c0_96, %c0_97, %c0_98], %153 {strides = array<i32>} : memref<2x16x128xf32, #tpu.memory_space<vmem>>, vector<2x16x128xf32>,
    return
  }
  func.func @transform_0(%arg0: i32) -> (i32, i32, i32) {
    %c0_i32 = arith.constant 0 : i32
    %c0_i32_0 = arith.constant 0 : i32
    %c0_i32_1 = arith.constant 0 : i32
    %c0_i32_2 = arith.constant 0 : i32
    return %c0_i32, %c0_i32_0, %c0_i32_1 : i32, i32, i32
  }
  func.func @transform_1(%arg0: i32) -> (i32, i32) {
    %c0_i32 = arith.constant 0 : i32
    %c0_i32_0 = arith.constant 0 : i32
    %c0_i32_1 = arith.constant 0 : i32
    return %c0_i32, %c0_i32_0 : i32, i32
  }
  func.func @transform_2(%arg0: i32) -> (i32, i32) {
    %c0_i32 = arith.constant 0 : i32
    %c0_i32_0 = arith.constant 0 : i32
    %c0_i32_1 = arith.constant 0 : i32
    return %c0_i32, %c0_i32_0 : i32, i32
  }
  func.func @transform_3(%arg0: i32) -> (i32, i32) {
    %c0_i32 = arith.constant 0 : i32
    %c0_i32_0 = arith.constant 0 : i32
    %c0_i32_1 = arith.constant 0 : i32
    return %c0_i32, %c0_i32_0 : i32, i32
  }
  func.func @transform_4(%arg0: i32) -> (i32, i32) {
    %c0_i32 = arith.constant 0 : i32
    %c0_i32_0 = arith.constant 0 : i32
    %c0_i32_1 = arith.constant 0 : i32
    return %c0_i32, %c0_i32_0 : i32, i32
  }
  func.func @transform_5(%arg0: i32) -> (i32, i32) {
    %c0_i32 = arith.constant 0 : i32
    %c0_i32_0 = arith.constant 0 : i32
    %c0_i32_1 = arith.constant 0 : i32
    return %c0_i32, %c0_i32_0 : i32, i32
  }
  func.func @transform_6(%arg0: i32) -> (i32, i32) {
    %c0_i32 = arith.constant 0 : i32
    %c0_i32_0 = arith.constant 0 : i32
    %c0_i32_1 = arith.constant 0 : i32
    return %c0_i32, %c0_i32_0 : i32, i32
  }
  func.func @transform_7(%arg0: i32) -> (i32, i32, i32) {
    %c0_i32 = arith.constant 0 : i32
    %c0_i32_0 = arith.constant 0 : i32
    %c0_i32_1 = arith.constant 0 : i32
    %c0_i32_2 = arith.constant 0 : i32
    return %c0_i32, %c0_i32_0, %c0_i32_1 : i32, i32, i32
  }
}

</mosaic_0001>

<llo_original>
// kernel: tpu_custom_call.1
$region0: #{tpu_custom_call.1}
  #allocation0 [shape = 'u32[]', space=smem, size = 0x4, offset = 0x4, fixed_abs, tag = 'smem constant byte address 0x4 - core index']
  #allocation1 [shape = 'u32[144,128]{1,0:T(1,128)}', space=vmem, size = 0x12000, scoped, tag = 'internal scratch']
  #allocation2 [shape = 'bf16[2,18,64]{2,1,0:T(8,128)(2,1)}', space=vmem, size = 0x3000, scoped, tag = 'scratch operand']
  #allocation3 [shape = 'bf16[2,18,128]{2,1,0:T(8,128)(2,1)}', space=vmem, size = 0x3000, scoped, tag = 'scratch operand']
  %s0 = inlined_call_operand.hbm [shape: bf16[2,16,64], index: 0, kind: input, shape index: {}]
  %s1 = inlined_call_operand.hbm [shape: bf16[192,128], index: 1, kind: input, shape index: {}]
  %s2 = inlined_call_operand.vmem [shape: f32[1,8], index: 2, kind: input, shape index: {}]
  %s3 = inlined_call_operand.vmem [shape: f32[1,8], index: 3, kind: input, shape index: {}]
  %s4 = inlined_call_operand.hbm [shape: bf16[384,128], index: 4, kind: input, shape index: {}]
  %s5 = inlined_call_operand.vmem [shape: f32[1,8], index: 5, kind: input, shape index: {}]
  %s6 = inlined_call_operand.vmem [shape: f32[1,8], index: 6, kind: input, shape index: {}]
  %s7 = inlined_call_operand.hbm [shape: f32[2,16,128], index: 7, kind: output, shape index: {}]
  %s8 = sld [smem:[#allocation0]]
  $region50: #{tpu_custom_call.1} parent=0
    _
  %s10 = ssub.s32 1, %s8
  %s11 = scalar_select 0, %s10, %s8
  $region1: #{tpu_custom_call.1} parent=0
    #allocation4 [shape = 'u8[8192]{0}', space=vmem, size = 0x2000, scoped, tag = 'input window, operand 0, single buffered']
    #allocation5 [shape = 's32[1]{0}', space=sflag, size = 0x4, scoped, tag = 'scoped memory for tpu_custom_call.1']
    #allocation6 [shape = 's32[1]{0}', space=sflag, size = 0x4, scoped, tag = 'scoped memory for tpu_custom_call.1']
    #allocation7 [shape = 'u8[49152]{0}', space=vmem, size = 0xc000, scoped, tag = 'input window, operand 1, single buffered']
    #allocation8 [shape = 's32[1]{0}', space=sflag, size = 0x4, scoped, tag = 'scoped memory for tpu_custom_call.1']
    #allocation9 [shape = 'u8[98304]{0}', space=vmem, size = 0x18000, scoped, tag = 'input window, operand 4, single buffered']
    #allocation10 [shape = 'u8[16384]{0}', space=vmem, size = 0x4000, scoped, tag = 'output window, operand 0, single buffered']
    %12 = vsyncpa [#allocation5], 0
    %13 = vsyncpa [#allocation8], 0
    %14 = vsyncpa [#allocation6], 0
    // Predicated region
    $region2: #{tpu_custom_call.1} parent=1 // pred_check
      _
    $region3: #{tpu_custom_call.1} parent=1 // pred_check_branch
      %16 = sbr.rel (0) target = $region5
    $region4: #{tpu_custom_call.1} parent=1 // pred_region
      %s18 = ssub.s32 256, 256
      %19 = vsyncadd [#allocation5], %s18
      %s20 = sshll.u32 [#allocation4], 4
      %s21 = int_to_ptr.vmem [resolvable:$true] %s20
      %26 = dma.hbm_to_vmem [thread:$0]  %s0, 256, %s21, [#allocation5], 64, 64, 4
    $region5: #{tpu_custom_call.1} parent=1 // pred_fallthru
      _
    // Predicated region
    $region6: #{tpu_custom_call.1} parent=1 // pred_check
      _
    $region7: #{tpu_custom_call.1} parent=1 // pred_check_branch
      %28 = sbr.rel (0) target = $region9
    $region8: #{tpu_custom_call.1} parent=1 // pred_region
      %s30 = ssub.s32 1536, 1536
      %31 = vsyncadd [#allocation8], %s30
      %s32 = sshll.u32 [#allocation7], 4
      %s33 = int_to_ptr.vmem [resolvable:$true] %s32
      %38 = dma.hbm_to_vmem [thread:$0]  %s1, 1536, %s33, [#allocation8], 64, 64, 4
    $region9: #{tpu_custom_call.1} parent=1 // pred_fallthru
      _
    // Predicated region
    $region10: #{tpu_custom_call.1} parent=1 // pred_check
      _
    $region11: #{tpu_custom_call.1} parent=1 // pred_check_branch
      %40 = sbr.rel (0) target = $region13
    $region12: #{tpu_custom_call.1} parent=1 // pred_region
      _
    $region13: #{tpu_custom_call.1} parent=1 // pred_fallthru
      _
    // Predicated region
    $region14: #{tpu_custom_call.1} parent=1 // pred_check
      _
    $region15: #{tpu_custom_call.1} parent=1 // pred_check_branch
      %42 = sbr.rel (0) target = $region17
    $region16: #{tpu_custom_call.1} parent=1 // pred_region
      _
    $region17: #{tpu_custom_call.1} parent=1 // pred_fallthru
      _
    // Predicated region
    $region18: #{tpu_custom_call.1} parent=1 // pred_check
      _
    $region19: #{tpu_custom_call.1} parent=1 // pred_check_branch
      %44 = sbr.rel (0) target = $region21
    $region20: #{tpu_custom_call.1} parent=1 // pred_region
      %s46 = ssub.s32 3072, 3072
      %47 = vsyncadd [#allocation8], %s46
      %s48 = sshll.u32 [#allocation9], 4
      %s49 = int_to_ptr.vmem [resolvable:$true] %s48
      %54 = dma.hbm_to_vmem [thread:$0]  %s4, 3072, %s49, [#allocation8], 64, 64, 4
    $region21: #{tpu_custom_call.1} parent=1 // pred_fallthru
      _
    // Predicated region
    $region22: #{tpu_custom_call.1} parent=1 // pred_check
      _
    $region23: #{tpu_custom_call.1} parent=1 // pred_check_branch
      %56 = sbr.rel (0) target = $region25
    $region24: #{tpu_custom_call.1} parent=1 // pred_region
      _
    $region25: #{tpu_custom_call.1} parent=1 // pred_fallthru
      _
    // Predicated region
    $region26: #{tpu_custom_call.1} parent=1 // pred_check
      _
    $region27: #{tpu_custom_call.1} parent=1 // pred_check_branch
      %58 = sbr.rel (0) target = $region29
    $region28: #{tpu_custom_call.1} parent=1 // pred_region
      _
    $region29: #{tpu_custom_call.1} parent=1 // pred_fallthru
      _
    // Predicated region
    $region30: #{tpu_custom_call.1} parent=1 // pred_check
      _
    $region31: #{tpu_custom_call.1} parent=1 // pred_check_branch
      %60 = sbr.rel (0) target = $region33
    $region32: #{tpu_custom_call.1} parent=1 // pred_region
      %61 = dma.done [#allocation5], 256
    $region33: #{tpu_custom_call.1} parent=1 // pred_fallthru
      _
    // Predicated region
    $region34: #{tpu_custom_call.1} parent=1 // pred_check
      _
    $region35: #{tpu_custom_call.1} parent=1 // pred_check_branch
      %63 = sbr.rel (0) target = $region37
    $region36: #{tpu_custom_call.1} parent=1 // pred_region
      %64 = dma.done [#allocation8], 1536
    $region37: #{tpu_custom_call.1} parent=1 // pred_fallthru
      _
    // Predicated region
    $region38: #{tpu_custom_call.1} parent=1 // pred_check
      _
    $region39: #{tpu_custom_call.1} parent=1 // pred_check_branch
      %66 = sbr.rel (0) target = $region41
    $region40: #{tpu_custom_call.1} parent=1 // pred_region
      %67 = dma.done [#allocation8], 3072
    $region41: #{tpu_custom_call.1} parent=1 // pred_fallthru
      _
    %vm69 = vcmask 516096
    %vm70 = vsmask.f32 256
    %vm71 = vmand %vm69, %vm70
    %v72 = vld [vmem:[#allocation2] sm:$0x1]
    %v73 = vsel %vm71, 0, %v72
    %74 = vst [vmem:[#allocation2] sm:$0x1] %v73
    %v75 = vld [vmem:[#allocation2 + $0xc] sm:$0x1]
    %v76 = vsel %vm71, 0, %v75
    %77 = vst [vmem:[#allocation2 + $0xc] sm:$0x1] %v76
    %vm78 = vsmask.f32 7938
    %vm79 = vmand %vm69, %vm78
    %v80 = vld [vmem:[#allocation2 + $0x8] sm:$0x1]
    %v81 = vsel %vm79, 0, %v80
    %82 = vst [vmem:[#allocation2 + $0x8] sm:$0x1] %v81
    %v83 = vld [vmem:[#allocation2 + $0x14] sm:$0x1]
    %v84 = vsel %vm79, 0, %v83
    %85 = vst [vmem:[#allocation2 + $0x14] sm:$0x1] %v84
    %v86 = vld [vmem:[#allocation4] sm:$0xf]
    %v87 = vld [vmem:[#allocation4 + $0x4] sm:$0xf]
    %v88 = vld [vmem:[#allocation4 + $0x8] sm:$0xf]
    %v89 = vld [vmem:[#allocation4 + $0xc] sm:$0xf]
    %vm90 = vsmask.f32 4368
    %vm91 = vmor %vm70, %vm90
    %v93 = vshrl.u32 %v86, 16
    %v95 = vrot.slane %v93, 7
    %v96 = vshll.u32 %v86, 16
    %v98 = vor.u32 %v95, %v96
    %v99 = vrot.slane %v95, 4
    %v101 = vshrl.u32 %v87, 16
    %v103 = vrot.slane %v101, 7
    %v104 = vshll.u32 %v87, 16
    %v106 = vor.u32 %v103, %v104
    %v107 = vsel %vm91, %v99, %v106
    %v108 = vrot.slane %v103, 4
    %v110 = vshrl.u32 %v88, 16
    %v112 = vrot.slane %v110, 7
    %v113 = vshll.u32 %v88, 16
    %v115 = vor.u32 %v112, %v113
    %v116 = vrot.slane %v112, 4
    %v118 = vshrl.u32 %v89, 16
    %v120 = vrot.slane %v118, 7
    %v121 = vshll.u32 %v89, 16
    %v123 = vor.u32 %v120, %v121
    %v124 = vsel %vm91, %v116, %v123
    %v125 = vrot.slane %v120, 4
    %vm132 = vcmask 519168
    %vm133 = vmand %vm132, %vm78
    %v134 = vld [vmem:[#allocation2] sm:$0xf]
    %v135 = vsel %vm133, %v98, %v134
    %136 = vst [vmem:[#allocation2] sm:$0xf] %v135
    %vm137 = vcmask 519168
    %138 = vst.msk [vmem:[#allocation2 + $0x4] sm:$0xf] %vm137, %v107
    %v139 = vld [vmem:[#allocation2 + $0x8] sm:$0x1]
    %v140 = vsel %vm71, %v108, %v139
    %141 = vst [vmem:[#allocation2 + $0x8] sm:$0x1] %v140
    %v142 = vld [vmem:[#allocation2 + $0xc] sm:$0xf]
    %v143 = vsel %vm133, %v115, %v142
    %144 = vst [vmem:[#allocation2 + $0xc] sm:$0xf] %v143
    %145 = vst.msk [vmem:[#allocation2 + $0x10] sm:$0xf] %vm137, %v124
    %v146 = vld [vmem:[#allocation2 + $0x14] sm:$0x1]
    %v147 = vsel %vm71, %v125, %v146
    %148 = vst [vmem:[#allocation2 + $0x14] sm:$0x1] %v147
    %v149 = vld [vmem:[#allocation2] sm:$0xf]
    %v150 = vld [vmem:[#allocation2 + $0x4] sm:$0xf]
    %v151 = vld [vmem:[#allocation2 + $0xc] sm:$0xf]
    %v152 = vld [vmem:[#allocation2 + $0x10] sm:$0xf]
    %v153 = vld [vmem:[#allocation2 + $0x8] sm:$0x1]
    %v154 = vld [vmem:[#allocation2 + $0x14] sm:$0x1]
    %v155 = vld [vmem:[#allocation2] sm:$0xe]
    %v156 = vld [vmem:[#allocation2 + $0xc] sm:$0xe]
    %v161 = vunpack.c.l.b16 %v149
    %v162 = vunpack.c.l.b16 %v150
    %v163 = vunpack.c.l.b16 %v151
    %v164 = vunpack.c.l.b16 %v152
    %v165 = vpack.c.b16 %v162, %v161
    %v166 = vpack.c.b16 %v164, %v163
    %v169 = vunpack.c.l.b16 %v153
    %v170 = vunpack.c.l.b16 %v154
    %v171 = vpack.c.b16 %v169, %v169
    %v172 = vpack.c.b16 %v170, %v170
    %vm173 = vsmask.f32 7424
    %v175 = vshrl.u32 %v165, 16
    %v177 = vshll.u32 %v165, 16
    %v179 = vrot.slane %v177, 1
    %v180 = vor.u32 %v175, %v179
    %v182 = vshll.u32 %v171, 16
    %v184 = vrot.slane %v182, 1
    %v185 = vsel %vm173, %v180, %v184
    %v187 = vshrl.u32 %v166, 16
    %v189 = vshll.u32 %v166, 16
    %v191 = vrot.slane %v189, 1
    %v192 = vor.u32 %v187, %v191
    %v194 = vshll.u32 %v172, 16
    %v196 = vrot.slane %v194, 1
    %v197 = vsel %vm173, %v192, %v196
    %198 = vrot.lane.b32.xlu0 %v185, 64
    %v199 = vpop.permute.xlu0 %198
    %200 = vrot.lane.b32.xlu0 %v197, 64
    %v201 = vpop.permute.xlu0 %200
    %v204 = vunpack.c.l.b16 %v155
    %v205 = vunpack.c.l.b16 %v156
    %v206 = vpack.c.b16 %v162, %v204
    %v207 = vpack.c.b16 %v164, %v205
    %vm208 = vcmask 1046528
    %v209 = vrot.slane %v206, 1
    %v210 = vrot.slane %v171, 1
    %v211 = vsel %vm208, %v209, %v210
    %v212 = vrot.slane %v207, 1
    %v213 = vrot.slane %v172, 1
    %v214 = vsel %vm208, %v212, %v213
    %vm215 = vcmask 523264
    %v217 = vsel %vm215, %v165, %v199
    %v220 = vsel %vm215, %v166, %v201
    %v222 = vld [vmem:[#allocation7] sm:$0xf]
    %v223 = vld [vmem:[#allocation7 + $0x4] sm:$0xf]
    %v224 = vld [vmem:[#allocation7 + $0x8] sm:$0xf]
    %v225 = vld [vmem:[#allocation7 + $0xc] sm:$0xf]
    %v226 = vld [vmem:[#allocation7 + $0x10] sm:$0xf]
    %v227 = vld [vmem:[#allocation7 + $0x14] sm:$0xf]
    %v228 = vld [vmem:[#allocation7 + $0x18] sm:$0xf]
    %v229 = vld [vmem:[#allocation7 + $0x1c] sm:$0xf]
    %v230 = vld [vmem:[#allocation7 + $0x20] sm:$0xf]
    %v231 = vld [vmem:[#allocation7 + $0x24] sm:$0xf]
    %v232 = vld [vmem:[#allocation7 + $0x28] sm:$0xf]
    %v233 = vld [vmem:[#allocation7 + $0x2c] sm:$0xf]
    %v234 = vld [vmem:[#allocation7 + $0x30] sm:$0xf]
    %v235 = vld [vmem:[#allocation7 + $0x34] sm:$0xf]
    %v236 = vld [vmem:[#allocation7 + $0x38] sm:$0xf]
    %v237 = vld [vmem:[#allocation7 + $0x3c] sm:$0xf]
    %v238 = vld [vmem:[#allocation7 + $0x40] sm:$0xf]
    %v239 = vld [vmem:[#allocation7 + $0x44] sm:$0xf]
    %v240 = vld [vmem:[#allocation7 + $0x48] sm:$0xf]
    %v241 = vld [vmem:[#allocation7 + $0x4c] sm:$0xf]
    %v242 = vld [vmem:[#allocation7 + $0x50] sm:$0xf]
    %v243 = vld [vmem:[#allocation7 + $0x54] sm:$0xf]
    %v244 = vld [vmem:[#allocation7 + $0x58] sm:$0xf]
    %v245 = vld [vmem:[#allocation7 + $0x5c] sm:$0xf]
    %v270 = vunpack.c.l.b16 %v222
    %v271 = vunpack.c.l.b16 %v223
    %v272 = vunpack.c.l.b16 %v224
    %v273 = vunpack.c.l.b16 %v225
    %v274 = vunpack.c.l.b16 %v226
    %v275 = vunpack.c.l.b16 %v227
    %v276 = vunpack.c.l.b16 %v228
    %v277 = vunpack.c.l.b16 %v229
    %v278 = vunpack.c.l.b16 %v230
    %v279 = vunpack.c.l.b16 %v231
    %v280 = vunpack.c.l.b16 %v232
    %v281 = vunpack.c.l.b16 %v233
    %v282 = vunpack.c.l.b16 %v234
    %v283 = vunpack.c.l.b16 %v235
    %v284 = vunpack.c.l.b16 %v236
    %v285 = vunpack.c.l.b16 %v237
    %v286 = vunpack.c.l.b16 %v238
    %v287 = vunpack.c.l.b16 %v239
    %v288 = vunpack.c.l.b16 %v240
    %v289 = vunpack.c.l.b16 %v241
    %v290 = vunpack.c.l.b16 %v242
    %v291 = vunpack.c.l.b16 %v243
    %v292 = vunpack.c.l.b16 %v244
    %v293 = vunpack.c.l.b16 %v245
    %v294 = vpack.c.b16 %v271, %v270
    %v295 = vpack.c.b16 %v273, %v272
    %v296 = vpack.c.b16 %v275, %v274
    %v297 = vpack.c.b16 %v277, %v276
    %v298 = vpack.c.b16 %v279, %v278
    %v299 = vpack.c.b16 %v281, %v280
    %v300 = vpack.c.b16 %v283, %v282
    %v301 = vpack.c.b16 %v285, %v284
    %v302 = vpack.c.b16 %v287, %v286
    %v303 = vpack.c.b16 %v289, %v288
    %v304 = vpack.c.b16 %v291, %v290
    %v305 = vpack.c.b16 %v293, %v292
    %v319 = vsel %vm215, %v211, 0
    %v322 = vsel %vm215, %v214, 0
    %324 = vmatprep.subr.bf16.mxu0 0
    %325 = vmatpush1.bf16.msra.mxu0 %v294
    %326 = vmatprep.subr.bf16.mxu0 0
    %327 = vmatpush1.bf16.msra.mxu0 %v295
    %328 = vmatprep.subr.bf16.mxu0 0
    %329 = vmatpush1.bf16.msra.mxu0 %v296
    %330 = vmatprep.subr.bf16.mxu0 0
    %331 = vmatpush1.bf16.msra.mxu0 %v297
    %332 = vmatprep.subr.bf16.mxu0 0
    %333 = vmatpush1.bf16.msra.mxu0 %v298
    %334 = vmatprep.subr.bf16.mxu0 0
    %335 = vmatpush1.bf16.msra.mxu0 %v299
    %336 = vmatprep.subr.bf16.mxu0 0
    %337 = vmatpush1.bf16.msra.mxu0 %v300
    %338 = vmatprep.subr.bf16.mxu0 0
    %339 = vmatpush1.bf16.msra.mxu0 %v301
    %340 = vmatprep.subr.bf16.mxu0 0
    %341 = vmatpush1.bf16.msra.mxu0 %v302
    %342 = vmatprep.subr.bf16.mxu0 0
    %343 = vmatpush1.bf16.msra.mxu0 %v303
    %344 = vmatprep.subr.bf16.mxu0 0
    %345 = vmatpush1.bf16.msra.mxu0 %v304
    %346 = vmatprep.subr.bf16.mxu0 0
    %347 = vmatpush1.bf16.msra.mxu0 %v305
    %348 = vmatprep.subr.bf16.mxu0 0
    %349 = vmatpush1.bf16.msra.mxu0 0
    %350 = vmatprep.subr.bf16.mxu0 0
    %351 = vmatpush1.bf16.msra.mxu0 0
    %352 = vmatprep.subr.bf16.mxu0 0
    %353 = vmatpush1.bf16.msra.mxu0 0
    %354 = vmatprep.subr.bf16.mxu0 0
    %355 = vmatpush1.bf16.msra.mxu0 0
    %356 = vmatprep.mubr.bf16.mxu0 %v319
    %357 = vmatmul.mubr.bf16.gmra.mrb[0].mxu0 %v217
    %v358 = vpop.f32.mrb[0].mxu0
    %v359 = vadd.f32 0.0, %v358
    %v360 = vpop.f32.mrb[0].mxu0
    %v361 = vpop.f32.mrb[0].mxu0
    %v362 = vadd.f32 0.0, %v361
    %v363 = vpop.f32.mrb[0].mxu0
    %364 = vmatprep.mubr.bf16.mxu0 %v322
    %365 = vmatmul.mubr.bf16.gmra.mrb[0].mxu0 %v220
    %v366 = vpop.f32.mrb[0].mxu0
    %v367 = vadd.f32 0.0, %v366
    %v368 = vpop.f32.mrb[0].mxu0
    %v369 = vpop.f32.mrb[0].mxu0
    %v370 = vadd.f32 0.0, %v369
    %v371 = vpop.f32.mrb[0].mxu0
    %372 = vdwg.mxu0
    %v373 = vadd.f32 %v359, %v362
    %v374 = vadd.f32 %v373, %v367
    %v375 = vadd.f32 %v374, %v370
    %v376 = vrot.slane %v375, 4
    %v377 = vadd.f32 %v375, %v376
    %v378 = vrot.slane %v377, 2
    %v379 = vadd.f32 %v377, %v378
    %v380 = vrot.slane %v379, 1
    %v381 = vadd.f32 %v379, %v380
    %v382 = vmul.f32 %v359, %v359
    %v383 = vmul.f32 %v362, %v362
    %v384 = vmul.f32 %v367, %v367
    %v385 = vmul.f32 %v370, %v370
    %v386 = vadd.f32 %v382, %v383
    %v387 = vadd.f32 %v386, %v384
    %v388 = vadd.f32 %v387, %v385
    %v389 = vrot.slane %v388, 4
    %v390 = vadd.f32 %v388, %v389
    %v391 = vrot.slane %v390, 2
    %v392 = vadd.f32 %v390, %v391
    %v393 = vrot.slane %v392, 1
    %v394 = vadd.f32 %v392, %v393
    %395 = vrot.lane.b32.xlu0 %v381, 8
    %v396 = vpop.permute.xlu0 %395
    %v397 = vadd.f32 %v381, %v396
    %398 = vrot.lane.b32.xlu0 %v397, 16
    %v399 = vpop.permute.xlu0 %398
    %v400 = vadd.f32 %v397, %v399
    %401 = vrot.lane.b32.xlu0 %v400, 32
    %v402 = vpop.permute.xlu0 %401
    %v403 = vadd.f32 %v400, %v402
    %404 = vrot.lane.b32.xlu0 %v403, 64
    %v405 = vpop.permute.xlu0 %404
    %v406 = vadd.f32 %v403, %v405
    %407 = vrot.lane.b32.xlu0 %v394, 8
    %v408 = vpop.permute.xlu0 %407
    %v409 = vadd.f32 %v394, %v408
    %410 = vrot.lane.b32.xlu0 %v409, 16
    %v411 = vpop.permute.xlu0 %410
    %v412 = vadd.f32 %v409, %v411
    %413 = vrot.lane.b32.xlu0 %v412, 32
    %v414 = vpop.permute.xlu0 %413
    %v415 = vadd.f32 %v412, %v414
    %416 = vrot.lane.b32.xlu0 %v415, 64
    %v417 = vpop.permute.xlu0 %416
    %v418 = vadd.f32 %v415, %v417
    %v419 = vmul.f32 %v406, 0.001953125
    %v420 = vmul.f32 %v418, 0.001953125
    %v421 = vmul.f32 %v419, %v419
    %v422 = vsub.f32 %v420, %v421
    %v423 = vld [vmem:[%s2] sm:$0x1]
    %v424 = vadd.f32 %v422, 1e-05
    %v425 = vrsqrt.pop %v424
    %v426 = vmul.f32 %v423, %v425
    %v427 = vld [vmem:[%s3] sm:$0x1]
    %v428 = vmul.f32 %v419, %v426
    %v429 = vsub.f32 %v427, %v428
    %vm430 = vcmask 64512
    %v431 = vsel %vm430, %v426, 0.0
    %432 = vrot.lane.b32.xlu0 %v431, 8
    %v433 = vpop.permute.xlu0 %432
    %v434 = vadd.f32 %v431, %v433
    %435 = vrot.lane.b32.xlu0 %v434, 16
    %v436 = vpop.permute.xlu0 %435
    %v437 = vadd.f32 %v434, %v436
    %438 = vrot.lane.b32.xlu0 %v437, 32
    %v439 = vpop.permute.xlu0 %438
    %v440 = vadd.f32 %v437, %v439
    %441 = vrot.lane.b32.xlu0 %v440, 64
    %v442 = vpop.permute.xlu0 %441
    %v443 = vadd.f32 %v440, %v442
    %v444 = vsel %vm430, %v429, 0.0
    %445 = vrot.lane.b32.xlu0 %v444, 8
    %v446 = vpop.permute.xlu0 %445
    %v447 = vadd.f32 %v444, %v446
    %448 = vrot.lane.b32.xlu0 %v447, 16
    %v449 = vpop.permute.xlu0 %448
    %v450 = vadd.f32 %v447, %v449
    %451 = vrot.lane.b32.xlu0 %v450, 32
    %v452 = vpop.permute.xlu0 %451
    %v453 = vadd.f32 %v450, %v452
    %454 = vrot.lane.b32.xlu0 %v453, 64
    %v455 = vpop.permute.xlu0 %454
    %v456 = vadd.f32 %v453, %v455
    %v457 = vlaneseq
    %v458 = vshrl.u32 %v457, 7
    %v459 = vsub.s32 0, %v458
    %v460 = vrot.slane %v443, %v459
    %v461 = vmul.f32 %v359, %v460
    %v462 = vmul.f32 %v362, %v460
    %v463 = vmul.f32 %v367, %v460
    %v464 = vmul.f32 %v370, %v460
    %v465 = vlaneseq
    %v466 = vshrl.u32 %v465, 7
    %v467 = vsub.s32 0, %v466
    %v468 = vrot.slane %v456, %v467
    %v469 = vadd.f32 %v461, %v468
    %v470 = vadd.f32 %v462, %v468
    %v471 = vadd.f32 %v463, %v468
    %v472 = vadd.f32 %v464, %v468
    %v473 = vmax.f32 %v469, 0.0
    %v474 = vmax.f32 %v470, 0.0
    %v475 = vmax.f32 %v471, 0.0
    %v476 = vmax.f32 %v472, 0.0
    %vm477 = vcmask 1040384
    %vm478 = vmand %vm477, %vm70
    %v479 = vld [vmem:[#allocation3] sm:$0x1]
    %v480 = vsel %vm478, 0, %v479
    %481 = vst [vmem:[#allocation3] sm:$0x1] %v480
    %v482 = vld [vmem:[#allocation3 + $0xc] sm:$0x1]
    %v483 = vsel %vm478, 0, %v482
    %484 = vst [vmem:[#allocation3 + $0xc] sm:$0x1] %v483
    %vm485 = vmand %vm477, %vm78
    %v486 = vld [vmem:[#allocation3 + $0x8] sm:$0x1]
    %v487 = vsel %vm485, 0, %v486
    %488 = vst [vmem:[#allocation3 + $0x8] sm:$0x1] %v487
    %v489 = vld [vmem:[#allocation3 + $0x14] sm:$0x1]
    %v490 = vsel %vm485, 0, %v489
    %491 = vst [vmem:[#allocation3 + $0x14] sm:$0x1] %v490
    %v492 = vpack.c.bf16 %v474, %v473
    %v493 = vpack.c.bf16 %v476, %v475
    %v496 = vunpack.c.l.b16 %v492
    %v497 = vunpack.c.h.b16 %v492
    %v498 = vunpack.c.l.b16 %v493
    %v499 = vunpack.c.h.b16 %v493
    %v500 = vpack.c.b16 %v496, %v496
    %v501 = vpack.c.b16 %v497, %v497
    %v502 = vpack.c.b16 %v498, %v498
    %v503 = vpack.c.b16 %v499, %v499
    %v505 = vshrl.u32 %v500, 16
    %v507 = vrot.slane %v505, 7
    %v508 = vshll.u32 %v500, 16
    %v510 = vor.u32 %v507, %v508
    %v511 = vrot.slane %v507, 4
    %v513 = vshrl.u32 %v501, 16
    %v515 = vrot.slane %v513, 7
    %v516 = vshll.u32 %v501, 16
    %v518 = vor.u32 %v515, %v516
    %v519 = vsel %vm91, %v511, %v518
    %v520 = vrot.slane %v515, 4
    %v522 = vshrl.u32 %v502, 16
    %v524 = vrot.slane %v522, 7
    %v525 = vshll.u32 %v502, 16
    %v527 = vor.u32 %v524, %v525
    %v528 = vrot.slane %v524, 4
    %v530 = vshrl.u32 %v503, 16
    %v532 = vrot.slane %v530, 7
    %v533 = vshll.u32 %v503, 16
    %v535 = vor.u32 %v532, %v533
    %v536 = vsel %vm91, %v528, %v535
    %v537 = vrot.slane %v532, 4
    %vm544 = vcmask 1043456
    %vm545 = vmand %vm544, %vm78
    %v546 = vld [vmem:[#allocation3] sm:$0xf]
    %v547 = vsel %vm545, %v510, %v546
    %548 = vst [vmem:[#allocation3] sm:$0xf] %v547
    %549 = vst [vmem:[#allocation3 + $0x4] sm:$0xf] %v519
    %v550 = vld [vmem:[#allocation3 + $0x8] sm:$0x1]
    %v551 = vsel %vm478, %v520, %v550
    %552 = vst [vmem:[#allocation3 + $0x8] sm:$0x1] %v551
    %v553 = vld [vmem:[#allocation3 + $0xc] sm:$0xf]
    %v554 = vsel %vm545, %v527, %v553
    %555 = vst [vmem:[#allocation3 + $0xc] sm:$0xf] %v554
    %556 = vst [vmem:[#allocation3 + $0x10] sm:$0xf] %v536
    %v557 = vld [vmem:[#allocation3 + $0x14] sm:$0x1]
    %v558 = vsel %vm478, %v537, %v557
    %559 = vst [vmem:[#allocation3 + $0x14] sm:$0x1] %v558
    %v560 = vld [vmem:[#allocation3] sm:$0xf]
    %v561 = vld [vmem:[#allocation3 + $0x4] sm:$0xf]
    %v562 = vld [vmem:[#allocation3 + $0xc] sm:$0xf]
    %v563 = vld [vmem:[#allocation3 + $0x10] sm:$0xf]
    %v564 = vld [vmem:[#allocation3 + $0x8] sm:$0x1]
    %v565 = vld [vmem:[#allocation3 + $0x14] sm:$0x1]
    %v566 = vld [vmem:[#allocation3] sm:$0xe]
    %v567 = vld [vmem:[#allocation3 + $0xc] sm:$0xe]
    %v572 = vunpack.c.l.b16 %v560
    %v573 = vunpack.c.l.b16 %v561
    %v574 = vunpack.c.l.b16 %v562
    %v575 = vunpack.c.l.b16 %v563
    %v576 = vpack.c.b16 %v573, %v572
    %v577 = vpack.c.b16 %v575, %v574
    %v582 = vunpack.c.l.b16 %v564
    %v583 = vunpack.c.l.b16 %v565
    %v584 = vpack.c.b16 %v582, %v582
    %v585 = vpack.c.b16 %v583, %v583
    %v587 = vshrl.u32 %v576, 16
    %v589 = vshll.u32 %v576, 16
    %v591 = vrot.slane %v589, 1
    %v592 = vor.u32 %v587, %v591
    %v594 = vshll.u32 %v584, 16
    %v596 = vrot.slane %v594, 1
    %v597 = vsel %vm173, %v592, %v596
    %v599 = vshrl.u32 %v577, 16
    %v601 = vshll.u32 %v577, 16
    %v603 = vrot.slane %v601, 1
    %v604 = vor.u32 %v599, %v603
    %v606 = vshll.u32 %v585, 16
    %v608 = vrot.slane %v606, 1
    %v609 = vsel %vm173, %v604, %v608
    %v614 = vunpack.c.l.b16 %v566
    %v615 = vunpack.c.l.b16 %v567
    %v616 = vpack.c.b16 %v573, %v614
    %v617 = vpack.c.b16 %v575, %v615
    %v618 = vrot.slane %v616, 1
    %v619 = vrot.slane %v584, 1
    %v620 = vsel %vm208, %v618, %v619
    %v621 = vrot.slane %v617, 1
    %v622 = vrot.slane %v585, 1
    %v623 = vsel %vm208, %v621, %v622
    %v626 = vld [vmem:[#allocation9] sm:$0xf]
    %v627 = vld [vmem:[#allocation9 + $0x4] sm:$0xf]
    %v628 = vld [vmem:[#allocation9 + $0x8] sm:$0xf]
    %v629 = vld [vmem:[#allocation9 + $0xc] sm:$0xf]
    %v630 = vld [vmem:[#allocation9 + $0x10] sm:$0xf]
    %v631 = vld [vmem:[#allocation9 + $0x14] sm:$0xf]
    %v632 = vld [vmem:[#allocation9 + $0x18] sm:$0xf]
    %v633 = vld [vmem:[#allocation9 + $0x1c] sm:$0xf]
    %v634 = vld [vmem:[#allocation9 + $0x20] sm:$0xf]
    %v635 = vld [vmem:[#allocation9 + $0x24] sm:$0xf]
    %v636 = vld [vmem:[#allocation9 + $0x28] sm:$0xf]
    %v637 = vld [vmem:[#allocation9 + $0x2c] sm:$0xf]
    %v638 = vld [vmem:[#allocation9 + $0x30] sm:$0xf]
    %v639 = vld [vmem:[#allocation9 + $0x34] sm:$0xf]
    %v640 = vld [vmem:[#allocation9 + $0x38] sm:$0xf]
    %v641 = vld [vmem:[#allocation9 + $0x3c] sm:$0xf]
    %v642 = vld [vmem:[#allocation9 + $0x40] sm:$0xf]
    %v643 = vld [vmem:[#allocation9 + $0x44] sm:$0xf]
    %v644 = vld [vmem:[#allocation9 + $0x48] sm:$0xf]
    %v645 = vld [vmem:[#allocation9 + $0x4c] sm:$0xf]
    %v646 = vld [vmem:[#allocation9 + $0x50] sm:$0xf]
    %v647 = vld [vmem:[#allocation9 + $0x54] sm:$0xf]
    %v648 = vld [vmem:[#allocation9 + $0x58] sm:$0xf]
    %v649 = vld [vmem:[#allocation9 + $0x5c] sm:$0xf]
    %v650 = vld [vmem:[#allocation9 + $0x60] sm:$0xf]
    %v651 = vld [vmem:[#allocation9 + $0x64] sm:$0xf]
    %v652 = vld [vmem:[#allocation9 + $0x68] sm:$0xf]
    %v653 = vld [vmem:[#allocation9 + $0x6c] sm:$0xf]
    %v654 = vld [vmem:[#allocation9 + $0x70] sm:$0xf]
    %v655 = vld [vmem:[#allocation9 + $0x74] sm:$0xf]
    %v656 = vld [vmem:[#allocation9 + $0x78] sm:$0xf]
    %v657 = vld [vmem:[#allocation9 + $0x7c] sm:$0xf]
    %v658 = vld [vmem:[#allocation9 + $0x80] sm:$0xf]
    %v659 = vld [vmem:[#allocation9 + $0x84] sm:$0xf]
    %v660 = vld [vmem:[#allocation9 + $0x88] sm:$0xf]
    %v661 = vld [vmem:[#allocation9 + $0x8c] sm:$0xf]
    %v662 = vld [vmem:[#allocation9 + $0x90] sm:$0xf]
    %v663 = vld [vmem:[#allocation9 + $0x94] sm:$0xf]
    %v664 = vld [vmem:[#allocation9 + $0x98] sm:$0xf]
    %v665 = vld [vmem:[#allocation9 + $0x9c] sm:$0xf]
    %v666 = vld [vmem:[#allocation9 + $0xa0] sm:$0xf]
    %v667 = vld [vmem:[#allocation9 + $0xa4] sm:$0xf]
    %v668 = vld [vmem:[#allocation9 + $0xa8] sm:$0xf]
    %v669 = vld [vmem:[#allocation9 + $0xac] sm:$0xf]
    %v670 = vld [vmem:[#allocation9 + $0xb0] sm:$0xf]
    %v671 = vld [vmem:[#allocation9 + $0xb4] sm:$0xf]
    %v672 = vld [vmem:[#allocation9 + $0xb8] sm:$0xf]
    %v673 = vld [vmem:[#allocation9 + $0xbc] sm:$0xf]
    %v722 = vunpack.c.l.b16 %v626
    %v723 = vunpack.c.l.b16 %v627
    %v724 = vunpack.c.l.b16 %v628
    %v725 = vunpack.c.l.b16 %v629
    %v726 = vunpack.c.l.b16 %v630
    %v727 = vunpack.c.l.b16 %v631
    %v728 = vunpack.c.l.b16 %v632
    %v729 = vunpack.c.l.b16 %v633
    %v730 = vunpack.c.l.b16 %v634
    %v731 = vunpack.c.l.b16 %v635
    %v732 = vunpack.c.l.b16 %v636
    %v733 = vunpack.c.l.b16 %v637
    %v734 = vunpack.c.l.b16 %v638
    %v735 = vunpack.c.l.b16 %v639
    %v736 = vunpack.c.l.b16 %v640
    %v737 = vunpack.c.l.b16 %v641
    %v738 = vunpack.c.l.b16 %v642
    %v739 = vunpack.c.l.b16 %v643
    %v740 = vunpack.c.l.b16 %v644
    %v741 = vunpack.c.l.b16 %v645
    %v742 = vunpack.c.l.b16 %v646
    %v743 = vunpack.c.l.b16 %v647
    %v744 = vunpack.c.l.b16 %v648
    %v745 = vunpack.c.l.b16 %v649
    %v746 = vunpack.c.l.b16 %v650
    %v747 = vunpack.c.l.b16 %v651
    %v748 = vunpack.c.l.b16 %v652
    %v749 = vunpack.c.l.b16 %v653
    %v750 = vunpack.c.l.b16 %v654
    %v751 = vunpack.c.l.b16 %v655
    %v752 = vunpack.c.l.b16 %v656
    %v753 = vunpack.c.l.b16 %v657
    %v754 = vunpack.c.l.b16 %v658
    %v755 = vunpack.c.l.b16 %v659
    %v756 = vunpack.c.l.b16 %v660
    %v757 = vunpack.c.l.b16 %v661
    %v758 = vunpack.c.l.b16 %v662
    %v759 = vunpack.c.l.b16 %v663
    %v760 = vunpack.c.l.b16 %v664
    %v761 = vunpack.c.l.b16 %v665
    %v762 = vunpack.c.l.b16 %v666
    %v763 = vunpack.c.l.b16 %v667
    %v764 = vunpack.c.l.b16 %v668
    %v765 = vunpack.c.l.b16 %v669
    %v766 = vunpack.c.l.b16 %v670
    %v767 = vunpack.c.l.b16 %v671
    %v768 = vunpack.c.l.b16 %v672
    %v769 = vunpack.c.l.b16 %v673
    %v770 = vpack.c.b16 %v723, %v722
    %v771 = vpack.c.b16 %v725, %v724
    %v772 = vpack.c.b16 %v727, %v726
    %v773 = vpack.c.b16 %v729, %v728
    %v774 = vpack.c.b16 %v731, %v730
    %v775 = vpack.c.b16 %v733, %v732
    %v776 = vpack.c.b16 %v735, %v734
    %v777 = vpack.c.b16 %v737, %v736
    %v778 = vpack.c.b16 %v739, %v738
    %v779 = vpack.c.b16 %v741, %v740
    %v780 = vpack.c.b16 %v743, %v742
    %v781 = vpack.c.b16 %v745, %v744
    %v782 = vpack.c.b16 %v747, %v746
    %v783 = vpack.c.b16 %v749, %v748
    %v784 = vpack.c.b16 %v751, %v750
    %v785 = vpack.c.b16 %v753, %v752
    %v786 = vpack.c.b16 %v755, %v754
    %v787 = vpack.c.b16 %v757, %v756
    %v788 = vpack.c.b16 %v759, %v758
    %v789 = vpack.c.b16 %v761, %v760
    %v790 = vpack.c.b16 %v763, %v762
    %v791 = vpack.c.b16 %v765, %v764
    %v792 = vpack.c.b16 %v767, %v766
    %v793 = vpack.c.b16 %v769, %v768
    %818 = vmatprep.subr.bf16.mxu0 0
    %819 = vmatpush1.bf16.msra.mxu0 %v770
    %820 = vmatprep.subr.bf16.mxu0 0
    %821 = vmatpush1.bf16.msra.mxu0 %v771
    %822 = vmatprep.subr.bf16.mxu0 0
    %823 = vmatpush1.bf16.msra.mxu0 %v772
    %824 = vmatprep.subr.bf16.mxu0 0
    %825 = vmatpush1.bf16.msra.mxu0 %v773
    %826 = vmatprep.subr.bf16.mxu0 0
    %827 = vmatpush1.bf16.msra.mxu0 %v774
    %828 = vmatprep.subr.bf16.mxu0 0
    %829 = vmatpush1.bf16.msra.mxu0 %v775
    %830 = vmatprep.subr.bf16.mxu0 0
    %831 = vmatpush1.bf16.msra.mxu0 %v776
    %832 = vmatprep.subr.bf16.mxu0 0
    %833 = vmatpush1.bf16.msra.mxu0 %v777
    %834 = vmatprep.subr.bf16.mxu0 0
    %835 = vmatpush1.bf16.msra.mxu0 %v778
    %836 = vmatprep.subr.bf16.mxu0 0
    %837 = vmatpush1.bf16.msra.mxu0 %v779
    %838 = vmatprep.subr.bf16.mxu0 0
    %839 = vmatpush1.bf16.msra.mxu0 %v780
    %840 = vmatprep.subr.bf16.mxu0 0
    %841 = vmatpush1.bf16.msra.mxu0 %v781
    %842 = vmatprep.subr.bf16.mxu0 0
    %843 = vmatpush1.bf16.msra.mxu0 %v782
    %844 = vmatprep.subr.bf16.mxu0 0
    %845 = vmatpush1.bf16.msra.mxu0 %v783
    %846 = vmatprep.subr.bf16.mxu0 0
    %847 = vmatpush1.bf16.msra.mxu0 %v784
    %848 = vmatprep.subr.bf16.mxu0 0
    %849 = vmatpush1.bf16.msra.mxu0 %v785
    %850 = vmatprep.mubr.bf16.mxu0 %v597
    %851 = vmatmul.mubr.bf16.gmra.mrb[0].mxu0 %v576
    %v852 = vpop.f32.mrb[0].mxu0
    %v853 = vadd.f32 0.0, %v852
    %v854 = vpop.f32.mrb[0].mxu0
    %v855 = vpop.f32.mrb[0].mxu0
    %v856 = vadd.f32 0.0, %v855
    %v857 = vpop.f32.mrb[0].mxu0
    %858 = vmatprep.mubr.bf16.mxu0 %v609
    %859 = vmatmul.mubr.bf16.gmra.mrb[0].mxu0 %v577
    %v860 = vpop.f32.mrb[0].mxu0
    %v861 = vadd.f32 0.0, %v860
    %v862 = vpop.f32.mrb[0].mxu0
    %v863 = vpop.f32.mrb[0].mxu0
    %v864 = vadd.f32 0.0, %v863
    %v865 = vpop.f32.mrb[0].mxu0
    %866 = vdwg.mxu0
    %867 = vmatprep.subr.bf16.mxu0 0
    %868 = vmatpush1.bf16.msra.mxu0 %v786
    %869 = vmatprep.subr.bf16.mxu0 0
    %870 = vmatpush1.bf16.msra.mxu0 %v787
    %871 = vmatprep.subr.bf16.mxu0 0
    %872 = vmatpush1.bf16.msra.mxu0 %v788
    %873 = vmatprep.subr.bf16.mxu0 0
    %874 = vmatpush1.bf16.msra.mxu0 %v789
    %875 = vmatprep.subr.bf16.mxu0 0
    %876 = vmatpush1.bf16.msra.mxu0 %v790
    %877 = vmatprep.subr.bf16.mxu0 0
    %878 = vmatpush1.bf16.msra.mxu0 %v791
    %879 = vmatprep.subr.bf16.mxu0 0
    %880 = vmatpush1.bf16.msra.mxu0 %v792
    %881 = vmatprep.subr.bf16.mxu0 0
    %882 = vmatpush1.bf16.msra.mxu0 %v793
    %883 = vmatprep.subr.bf16.mxu0 0
    %884 = vmatpush1.bf16.msra.mxu0 0
    %885 = vmatprep.subr.bf16.mxu0 0
    %886 = vmatpush1.bf16.msra.mxu0 0
    %887 = vmatprep.subr.bf16.mxu0 0
    %888 = vmatpush1.bf16.msra.mxu0 0
    %889 = vmatprep.subr.bf16.mxu0 0
    %890 = vmatpush1.bf16.msra.mxu0 0
    %891 = vmatprep.subr.bf16.mxu0 0
    %892 = vmatpush1.bf16.msra.mxu0 0
    %893 = vmatprep.subr.bf16.mxu0 0
    %894 = vmatpush1.bf16.msra.mxu0 0
    %895 = vmatprep.subr.bf16.mxu0 0
    %896 = vmatpush1.bf16.msra.mxu0 0
    %897 = vmatprep.subr.bf16.mxu0 0
    %898 = vmatpush1.bf16.msra.mxu0 0
    %899 = vmatprep.mubr.bf16.mxu0 0
    %900 = vmatmul.mubr.bf16.gmra.mrb[0].mxu0 %v620
    %v901 = vpop.f32.mrb[0].mxu0
    %v902 = vadd.f32 %v853, %v901
    %v903 = vpop.f32.mrb[0].mxu0
    %v904 = vpop.f32.mrb[0].mxu0
    %v905 = vadd.f32 %v856, %v904
    %v906 = vpop.f32.mrb[0].mxu0
    %907 = vmatprep.mubr.bf16.mxu0 0
    %908 = vmatmul.mubr.bf16.gmra.mrb[0].mxu0 %v623
    %v909 = vpop.f32.mrb[0].mxu0
    %v910 = vadd.f32 %v861, %v909
    %v911 = vpop.f32.mrb[0].mxu0
    %v912 = vpop.f32.mrb[0].mxu0
    %v913 = vadd.f32 %v864, %v912
    %v914 = vpop.f32.mrb[0].mxu0
    %915 = vdwg.mxu0
    %v916 = vadd.f32 %v902, %v905
    %v917 = vadd.f32 %v916, %v910
    %v918 = vadd.f32 %v917, %v913
    %v919 = vrot.slane %v918, 4
    %v920 = vadd.f32 %v918, %v919
    %v921 = vrot.slane %v920, 2
    %v922 = vadd.f32 %v920, %v921
    %v923 = vrot.slane %v922, 1
    %v924 = vadd.f32 %v922, %v923
    %v925 = vmul.f32 %v902, %v902
    %v926 = vmul.f32 %v905, %v905
    %v927 = vmul.f32 %v910, %v910
    %v928 = vmul.f32 %v913, %v913
    %v929 = vadd.f32 %v925, %v926
    %v930 = vadd.f32 %v929, %v927
    %v931 = vadd.f32 %v930, %v928
    %v932 = vrot.slane %v931, 4
    %v933 = vadd.f32 %v931, %v932
    %v934 = vrot.slane %v933, 2
    %v935 = vadd.f32 %v933, %v934
    %v936 = vrot.slane %v935, 1
    %v937 = vadd.f32 %v935, %v936
    %938 = vrot.lane.b32.xlu0 %v924, 8
    %v939 = vpop.permute.xlu0 %938
    %v940 = vadd.f32 %v924, %v939
    %941 = vrot.lane.b32.xlu0 %v940, 16
    %v942 = vpop.permute.xlu0 %941
    %v943 = vadd.f32 %v940, %v942
    %944 = vrot.lane.b32.xlu0 %v943, 32
    %v945 = vpop.permute.xlu0 %944
    %v946 = vadd.f32 %v943, %v945
    %947 = vrot.lane.b32.xlu0 %v946, 64
    %v948 = vpop.permute.xlu0 %947
    %v949 = vadd.f32 %v946, %v948
    %950 = vrot.lane.b32.xlu0 %v937, 8
    %v951 = vpop.permute.xlu0 %950
    %v952 = vadd.f32 %v937, %v951
    %953 = vrot.lane.b32.xlu0 %v952, 16
    %v954 = vpop.permute.xlu0 %953
    %v955 = vadd.f32 %v952, %v954
    %956 = vrot.lane.b32.xlu0 %v955, 32
    %v957 = vpop.permute.xlu0 %956
    %v958 = vadd.f32 %v955, %v957
    %959 = vrot.lane.b32.xlu0 %v958, 64
    %v960 = vpop.permute.xlu0 %959
    %v961 = vadd.f32 %v958, %v960
    %v962 = vmul.f32 %v949, 0.001953125
    %v963 = vmul.f32 %v961, 0.001953125
    %v964 = vmul.f32 %v962, %v962
    %v965 = vsub.f32 %v963, %v964
    %v966 = vld [vmem:[%s5] sm:$0x1]
    %v967 = vadd.f32 %v965, 1e-05
    %v968 = vrsqrt.pop %v967
    %v969 = vmul.f32 %v966, %v968
    %v970 = vld [vmem:[%s6] sm:$0x1]
    %v971 = vmul.f32 %v962, %v969
    %v972 = vsub.f32 %v970, %v971
    %v973 = vsel %vm430, %v969, 0.0
    %974 = vrot.lane.b32.xlu0 %v973, 8
    %v975 = vpop.permute.xlu0 %974
    %v976 = vadd.f32 %v973, %v975
    %977 = vrot.lane.b32.xlu0 %v976, 16
    %v978 = vpop.permute.xlu0 %977
    %v979 = vadd.f32 %v976, %v978
    %980 = vrot.lane.b32.xlu0 %v979, 32
    %v981 = vpop.permute.xlu0 %980
    %v982 = vadd.f32 %v979, %v981
    %983 = vrot.lane.b32.xlu0 %v982, 64
    %v984 = vpop.permute.xlu0 %983
    %v985 = vadd.f32 %v982, %v984
    %v986 = vsel %vm430, %v972, 0.0
    %987 = vrot.lane.b32.xlu0 %v986, 8
    %v988 = vpop.permute.xlu0 %987
    %v989 = vadd.f32 %v986, %v988
    %990 = vrot.lane.b32.xlu0 %v989, 16
    %v991 = vpop.permute.xlu0 %990
    %v992 = vadd.f32 %v989, %v991
    %993 = vrot.lane.b32.xlu0 %v992, 32
    %v994 = vpop.permute.xlu0 %993
    %v995 = vadd.f32 %v992, %v994
    %996 = vrot.lane.b32.xlu0 %v995, 64
    %v997 = vpop.permute.xlu0 %996
    %v998 = vadd.f32 %v995, %v997
    %v999 = vlaneseq
    %v1000 = vshrl.u32 %v999, 7
    %v1001 = vsub.s32 0, %v1000
    %v1002 = vrot.slane %v985, %v1001
    %v1003 = vmul.f32 %v902, %v1002
    %v1004 = vmul.f32 %v905, %v1002
    %v1005 = vmul.f32 %v910, %v1002
    %v1006 = vmul.f32 %v913, %v1002
    %v1007 = vlaneseq
    %v1008 = vshrl.u32 %v1007, 7
    %v1009 = vsub.s32 0, %v1008
    %v1010 = vrot.slane %v998, %v1009
    %v1011 = vadd.f32 %v1003, %v1010
    %v1012 = vadd.f32 %v1004, %v1010
    %v1013 = vadd.f32 %v1005, %v1010
    %v1014 = vadd.f32 %v1006, %v1010
    %v1015 = vmax.f32 %v1011, 0.0
    %v1016 = vmax.f32 %v1012, 0.0
    %v1017 = vmax.f32 %v1013, 0.0
    %v1018 = vmax.f32 %v1014, 0.0
    %1019 = vst [vmem:[#allocation10] sm:$0xff] %v1015
    %1020 = vst [vmem:[#allocation10 + $0x8] sm:$0xff] %v1016
    %1021 = vst [vmem:[#allocation10 + $0x10] sm:$0xff] %v1017
    %1022 = vst [vmem:[#allocation10 + $0x18] sm:$0xff] %v1018
    // Predicated region
    $region42: #{tpu_custom_call.1} parent=1 // pred_check
      _
    $region43: #{tpu_custom_call.1} parent=1 // pred_check_branch
      %1024 = sbr.rel (0) target = $region45
    $region44: #{tpu_custom_call.1} parent=1 // pred_region
      %s1026 = ssub.s32 512, 512
      %1027 = vsyncadd [#allocation6], %s1026
      %s1028 = sshll.u32 [#allocation10], 4
      %s1029 = int_to_ptr.vmem [resolvable:$true] %s1028
      %1034 = dma.vmem_to_hbm [thread:$0]  %s1029, 512, %s7, [#allocation6], 128, 128, 8
    $region45: #{tpu_custom_call.1} parent=1 // pred_fallthru
      _
    // Predicated region
    $region46: #{tpu_custom_call.1} parent=1 // pred_check
      _
    $region47: #{tpu_custom_call.1} parent=1 // pred_check_branch
      %1036 = sbr.rel (0) target = $region49
    $region48: #{tpu_custom_call.1} parent=1 // pred_region
      %1037 = dma.done [#allocation6], 512
    $region49: #{tpu_custom_call.1} parent=1 // pred_fallthru
      _
    %1038 = vsyncpa [#allocation5], 1
    %1039 = vsyncpa [#allocation8], 1
    %1040 = vsyncpa [#allocation6], 1

</llo_original>
